<compile_context>
chip_gen: v7x
topology: tpu7x:2x2x1
jax: 0.10.0
libtpu: 0.0.40
codegen_flags: <defaults>
</compile_context>

<pallas_src>
import jax
import jax.numpy as jnp
from jax.experimental import pallas as pl
from jax.experimental.pallas import tpu as pltpu


def _round_up(v, m):
    return ((v + m - 1) // m) * m


def _residual_ffn_kernel(x_ref, w1_ref, b1_ref, w2_ref, b2_ref, o_ref, acc_ref):
    # x_ref:  (TM, DP)   f32 tile of tokens (resident across the hidden axis)
    # w1_ref: (DP, TH)   bf16 chunk of W1
    # b1_ref: (1, TH)    f32 chunk of b1
    # w2_ref: (TH, DP)   bf16 chunk of W2
    # b2_ref: (1, DP)    f32 full b2
    # o_ref:  (TM, DP)   output tile (written on last hidden chunk)
    # acc_ref:(TM, DP)   f32 VMEM accumulator
    k = pl.program_id(1)
    nk = pl.num_programs(1)

    @pl.when(k == 0)
    def _init():
        acc_ref[...] = jnp.zeros_like(acc_ref)

    x_f32 = x_ref[...]                       # keep f32 for bias/GELU/residual
    x_bf16 = x_f32.astype(jnp.bfloat16)      # bf16 only at the MXU input

    # fn(x) chunk: GELU(x @ W1[:, h0:h1] + b1[h0:h1]) @ W2[h0:h1, :]
    h = jnp.dot(x_bf16, w1_ref[...], preferred_element_type=jnp.float32)
    h = jax.nn.gelu(h + b1_ref[...], approximate=True)
    acc_ref[...] += jnp.dot(
        h.astype(jnp.bfloat16), w2_ref[...], preferred_element_type=jnp.float32
    )

    @pl.when(k == nk - 1)
    def _finalize():
        # fn(x) + x  (the Residual module's own compute), + b2 once
        o_ref[...] = (acc_ref[...] + b2_ref[...] + x_f32).astype(o_ref.dtype)


def residual_ffn(x, w1, b1, w2, b2, *, tile_m=256, tile_h=512):
    """x: (rows, dim) float32. Returns fn(x) + x with fn = Linear/GELU/Linear."""
    rows, dim = x.shape
    hidden = w1.shape[1]

    # Lane-dense padding: last dims become multiples of 128.
    dim_p = _round_up(dim, 128)
    hidden_p128 = _round_up(hidden, 128)

    # Hidden chunk size (multiple of 128, no bigger than the padded hidden).
    tile_h = _round_up(min(tile_h, hidden_p128), 128)
    hidden_p = _round_up(hidden, tile_h)

    # Row tile: big for real shapes, clamped (multiple of 8) for tiny inputs.
    tile_m_eff = min(tile_m, _round_up(rows, 8))
    rows_p = _round_up(rows, tile_m_eff)

    # Zero-pad (zeros contribute exactly 0 through matmul/GELU/matmul).
    x_p = jnp.pad(x, ((0, rows_p - rows), (0, dim_p - dim)))
    w1_p = jnp.pad(w1, ((0, dim_p - dim), (0, hidden_p - hidden))).astype(jnp.bfloat16)
    b1_p = jnp.pad(b1, ((0, 0), (0, hidden_p - hidden)))
    w2_p = jnp.pad(w2, ((0, hidden_p - hidden), (0, dim_p - dim))).astype(jnp.bfloat16)
    b2_p = jnp.pad(b2, ((0, 0), (0, dim_p - dim)))

    grid = (rows_p // tile_m_eff, hidden_p // tile_h)

    # Explicit VMEM budget (double-buffered inputs/output + scratch), <= 64 MiB
    # so the same setting is legal on v7x.
    est = 2 * (
        tile_m_eff * dim_p * 4      # x tile (f32)
        + dim_p * tile_h * 2        # w1 chunk (bf16)
        + tile_h * 4                # b1 chunk (f32)
        + tile_h * dim_p * 2        # w2 chunk (bf16)
        + dim_p * 4                 # b2 (f32)
        + tile_m_eff * dim_p * 4    # out tile (f32)
    ) + tile_m_eff * dim_p * 4      # accumulator scratch
    vmem_limit = min(max(2 * est, 32 * 1024 * 1024), 64 * 1024 * 1024)

    out_p = pl.pallas_call(
        _residual_ffn_kernel,
        out_shape=jax.ShapeDtypeStruct((rows_p, dim_p), x.dtype),
        grid_spec=pltpu.PrefetchScalarGridSpec(
            num_scalar_prefetch=0,
            grid=grid,
            in_specs=[
                pl.BlockSpec((tile_m_eff, dim_p), lambda i, k: (i, 0)),  # x tile
                pl.BlockSpec((dim_p, tile_h), lambda i, k: (0, k)),      # w1 chunk
                pl.BlockSpec((1, tile_h), lambda i, k: (0, k)),          # b1 chunk
                pl.BlockSpec((tile_h, dim_p), lambda i, k: (k, 0)),      # w2 chunk
                pl.BlockSpec((1, dim_p), lambda i, k: (0, 0)),           # b2
            ],
            out_specs=pl.BlockSpec((tile_m_eff, dim_p), lambda i, k: (i, 0)),
            scratch_shapes=[pltpu.VMEM((tile_m_eff, dim_p), jnp.float32)],
        ),
        compiler_params=pltpu.CompilerParams(
            dimension_semantics=("parallel", "arbitrary"),
            vmem_limit_bytes=vmem_limit,
        ),
    )(x_p, w1_p, b1_p, w2_p, b2_p)

    return out_p[:rows, :dim]


def residual_ffn_ref(x, w1, b1, w2, b2):
    """Reference with the same numeric recipe (bf16 MXU inputs, f32 accum)."""
    xb = x.astype(jnp.bfloat16)
    h = jnp.dot(xb, w1.astype(jnp.bfloat16), preferred_element_type=jnp.float32) + b1
    h = jax.nn.gelu(h, approximate=True)
    y = (
        jnp.dot(
            h.astype(jnp.bfloat16),
            w2.astype(jnp.bfloat16),
            preferred_element_type=jnp.float32,
        )
        + b2
    )
    return y + x


if __name__ == "__main__":
    # Small shapes: batch=2, seq=8, dim=32, hidden=64
    batch, seq, dim, hidden = 2, 8, 32, 64

    key = jax.random.PRNGKey(0)
    kx, kw1, kb1, kw2, kb2 = jax.random.split(key, 5)

    x_bsd = jax.random.normal(kx, (batch, seq, dim), dtype=jnp.float32)
    # Deterministic synthetic parameters (shapes from a typical FeedForward fn).
    w1 = jax.random.normal(kw1, (dim, hidden), dtype=jnp.float32) * 0.05
    b1 = jax.random.normal(kb1, (1, hidden), dtype=jnp.float32) * 0.01
    w2 = jax.random.normal(kw2, (hidden, dim), dtype=jnp.float32) * 0.05
    b2 = jax.random.normal(kb2, (1, dim), dtype=jnp.float32) * 0.01

    # Flatten (batch, seq, dim) -> (rows, dim); the wrapper pads to lane-dense
    # (multiple-of-128) feature dims and slices the result back.
    x = x_bsd.reshape(batch * seq, dim)

    out = residual_ffn(x, w1, b1, w2, b2, tile_m=256, tile_h=512)
    out = jax.block_until_ready(out).reshape(batch, seq, dim)

    ref = residual_ffn_ref(x, w1, b1, w2, b2).reshape(batch, seq, dim)

    assert out.shape == x_bsd.shape
    assert jnp.allclose(out, ref, atol=1e-3, rtol=1e-3), "mismatch vs reference"
    print("KERNEL_OK")
</pallas_src>

<mosaic_0001>
module attributes {stable_mosaic.version = 11 : i64} {
  func.func @_residual_ffn_kernel(%arg0: i32, %arg1: i32, %arg2: memref<16x128xf32, #tpu.memory_space<vmem>>, %arg3: memref<128x128xbf16, #tpu.memory_space<vmem>>, %arg4: memref<1x128xf32, #tpu.memory_space<vmem>>, %arg5: memref<128x128xbf16, #tpu.memory_space<vmem>>, %arg6: memref<1x128xf32, #tpu.memory_space<vmem>>, %arg7: memref<16x128xf32, #tpu.memory_space<vmem>>, %arg8: memref<16x128xf32, #tpu.memory_space<vmem>>) attributes {dimension_semantics = [#tpu.dimension_semantics<parallel>, #tpu.dimension_semantics<arbitrary>], iteration_bounds = array<i64: 1, 1>, scalar_prefetch = 0 : i64, scratch_operands = 1 : i64, tpu.core_type = #tpu.core_type<tc>, window_params = [{transform_indices = @transform_0, window_bounds = array<i64: 16, 128>}, {transform_indices = @transform_1, window_bounds = array<i64: 128, 128>}, {transform_indices = @transform_2, window_bounds = array<i64: 1, 128>}, {transform_indices = @transform_3, window_bounds = array<i64: 128, 128>}, {pipeline_mode = #tpu.pipeline_mode<synchronous>, transform_indices = @transform_4, window_bounds = array<i64: 1, 128>}, {transform_indices = @transform_5, window_bounds = array<i64: 16, 128>}]} {
    %c0_i32 = arith.constant 0 : i32
    %0 = arith.cmpi eq, %arg1, %c0_i32 : i32
    %1 = arith.extui %0 : i1 to i32
    %c0_i32_0 = arith.constant 0 : i32
    %2 = arith.cmpi ne, %1, %c0_i32_0 : i32
    scf.if %2 {
      %cst_19 = arith.constant 0.000000e+00 : f32
      %32 = vector.broadcast %cst_19 : f32 to vector<16x128xf32>
      %c0_20 = arith.constant 0 : index
      %c0_21 = arith.constant 0 : index
      %33 = vector.load %arg8[%c0_20, %c0_21] : memref<16x128xf32, #tpu.memory_space<vmem>>, vector<16x128xf32>
      tpu.vector_store %arg8[%c0_20, %c0_21], %32 {strides = array<i32>} : memref<16x128xf32, #tpu.memory_space<vmem>>, vector<16x128xf32>,
    } else {
    }
    %c0 = arith.constant 0 : index
    %c0_1 = arith.constant 0 : index
    %3 = vector.load %arg2[%c0, %c0_1] : memref<16x128xf32, #tpu.memory_space<vmem>>, vector<16x128xf32>
    %4 = arith.truncf %3 : vector<16x128xf32> to vector<16x128xbf16>
    %c0_2 = arith.constant 0 : index
    %c0_3 = arith.constant 0 : index
    %5 = vector.load %arg3[%c0_2, %c0_3] : memref<128x128xbf16, #tpu.memory_space<vmem>>, vector<128x128xbf16>
    %cst = arith.constant dense<0.000000e+00> : vector<16x128xf32>
    %6 = tpu.matmul %4, %5, %cst {dimension_numbers = #tpu.dot_dimension_numbers<[1], [0], [0], [1], [0, 0, 1, 1], [], []>} : vector<16x128xbf16>, vector<128x128xbf16>, vector<16x128xf32> -> vector<16x128xf32>
    %c0_4 = arith.constant 0 : index
    %c0_5 = arith.constant 0 : index
    %7 = vector.load %arg4[%c0_4, %c0_5] : memref<1x128xf32, #tpu.memory_space<vmem>>, vector<1x128xf32>
    %8 = vector.broadcast %7 : vector<1x128xf32> to vector<16x128xf32>
    %9 = arith.addf %6, %8 : vector<16x128xf32>
    %10 = arith.mulf %9, %9 : vector<16x128xf32>
    %11 = arith.mulf %9, %10 : vector<16x128xf32>
    %cst_6 = arith.constant 4.471500e-02 : f32
    %12 = vector.broadcast %cst_6 : f32 to vector<16x128xf32>
    %13 = arith.mulf %12, %11 : vector<16x128xf32>
    %14 = arith.addf %9, %13 : vector<16x128xf32>
    %cst_7 = arith.constant 0.797884583 : f32
    %15 = vector.broadcast %cst_7 : f32 to vector<16x128xf32>
    %16 = arith.mulf %15, %14 : vector<16x128xf32>
    %17 = math.tanh %16 : vector<16x128xf32>
    %cst_8 = arith.constant 1.000000e+00 : f32
    %18 = vector.broadcast %cst_8 : f32 to vector<16x128xf32>
    %19 = arith.addf %18, %17 : vector<16x128xf32>
    %cst_9 = arith.constant 5.000000e-01 : f32
    %20 = vector.broadcast %cst_9 : f32 to vector<16x128xf32>
    %21 = arith.mulf %20, %19 : vector<16x128xf32>
    %22 = arith.mulf %9, %21 : vector<16x128xf32>
    %c0_10 = arith.constant 0 : index
    %c0_11 = arith.constant 0 : index
    %23 = vector.load %arg8[%c0_10, %c0_11] : memref<16x128xf32, #tpu.memory_space<vmem>>, vector<16x128xf32>
    %24 = arith.truncf %22 : vector<16x128xf32> to vector<16x128xbf16>
    %c0_12 = arith.constant 0 : index
    %c0_13 = arith.constant 0 : index
    %25 = vector.load %arg5[%c0_12, %c0_13] : memref<128x128xbf16, #tpu.memory_space<vmem>>, vector<128x128xbf16>
    %cst_14 = arith.constant dense<0.000000e+00> : vector<16x128xf32>
    %26 = tpu.matmul %24, %25, %cst_14 {dimension_numbers = #tpu.dot_dimension_numbers<[1], [0], [0], [1], [0, 0, 1, 1], [], []>} : vector<16x128xbf16>, vector<128x128xbf16>, vector<16x128xf32> -> vector<16x128xf32>
    %27 = arith.addf %23, %26 : vector<16x128xf32>
    %c0_15 = arith.constant 0 : index
    %c0_16 = arith.constant 0 : index
    %28 = vector.load %arg8[%c0_15, %c0_16] : memref<16x128xf32, #tpu.memory_space<vmem>>, vector<16x128xf32>
    tpu.vector_store %arg8[%c0_15, %c0_16], %27 {strides = array<i32>} : memref<16x128xf32, #tpu.memory_space<vmem>>, vector<16x128xf32>,
    %c0_i32_17 = arith.constant 0 : i32
    %29 = arith.cmpi eq, %arg1, %c0_i32_17 : i32
    %30 = arith.extui %29 : i1 to i32
    %c0_i32_18 = arith.constant 0 : i32
    %31 = arith.cmpi ne, %30, %c0_i32_18 : i32
    scf.if %31 {
      %c0_19 = arith.constant 0 : index
      %c0_20 = arith.constant 0 : index
      %32 = vector.load %arg8[%c0_19, %c0_20] : memref<16x128xf32, #tpu.memory_space<vmem>>, vector<16x128xf32>
      %c0_21 = arith.constant 0 : index
      %c0_22 = arith.constant 0 : index
      %33 = vector.load %arg6[%c0_21, %c0_22] : memref<1x128xf32, #tpu.memory_space<vmem>>, vector<1x128xf32>
      %34 = vector.broadcast %33 : vector<1x128xf32> to vector<16x128xf32>
      %35 = arith.addf %32, %34 : vector<16x128xf32>
      %36 = arith.addf %35, %3 : vector<16x128xf32>
      %c0_23 = arith.constant 0 : index
      %c0_24 = arith.constant 0 : index
      %37 = vector.load %arg7[%c0_23, %c0_24] : memref<16x128xf32, #tpu.memory_space<vmem>>, vector<16x128xf32>
      tpu.vector_store %arg7[%c0_23, %c0_24], %36 {strides = array<i32>} : memref<16x128xf32, #tpu.memory_space<vmem>>, vector<16x128xf32>,
    } else {
    }
    return
  }
  func.func @transform_0(%arg0: i32, %arg1: i32) -> (i32, i32) {
    %c0_i32 = arith.constant 0 : i32
    %c0_i32_0 = arith.constant 0 : i32
    return %arg0, %c0_i32 : i32, i32
  }
  func.func @transform_1(%arg0: i32, %arg1: i32) -> (i32, i32) {
    %c0_i32 = arith.constant 0 : i32
    %c0_i32_0 = arith.constant 0 : i32
    return %c0_i32, %arg1 : i32, i32
  }
  func.func @transform_2(%arg0: i32, %arg1: i32) -> (i32, i32) {
    %c0_i32 = arith.constant 0 : i32
    %c0_i32_0 = arith.constant 0 : i32
    return %c0_i32, %arg1 : i32, i32
  }
  func.func @transform_3(%arg0: i32, %arg1: i32) -> (i32, i32) {
    %c0_i32 = arith.constant 0 : i32
    %c0_i32_0 = arith.constant 0 : i32
    return %arg1, %c0_i32 : i32, i32
  }
  func.func @transform_4(%arg0: i32, %arg1: i32) -> (i32, i32) {
    %c0_i32 = arith.constant 0 : i32
    %c0_i32_0 = arith.constant 0 : i32
    %c0_i32_1 = arith.constant 0 : i32
    return %c0_i32, %c0_i32_0 : i32, i32
  }
  func.func @transform_5(%arg0: i32, %arg1: i32) -> (i32, i32) {
    %c0_i32 = arith.constant 0 : i32
    %c0_i32_0 = arith.constant 0 : i32
    return %arg0, %c0_i32 : i32, i32
  }
}

</mosaic_0001>

<llo_original>
// kernel: tpu_custom_call.1
$region0: #{tpu_custom_call.1}
  #allocation0 [shape = 'u32[]', space=smem, size = 0x4, offset = 0x4, fixed_abs, tag = 'smem constant byte address 0x4 - core index']
  #allocation1 [shape = 'u32[144,128]{1,0:T(1,128)}', space=vmem, size = 0x12000, scoped, tag = 'internal scratch']
  #allocation2 [shape = 'f32[16,128]{1,0:T(8,128)}', space=vmem, size = 0x2000, scoped, tag = 'scratch operand']
  %s0 = inlined_call_operand.hbm [shape: f32[16,128], index: 0, kind: input, shape index: {}]
  %s1 = inlined_call_operand.hbm [shape: bf16[128,128], index: 1, kind: input, shape index: {}]
  %s2 = inlined_call_operand.vmem [shape: f32[1,128], index: 2, kind: input, shape index: {}]
  %s3 = inlined_call_operand.hbm [shape: bf16[128,128], index: 3, kind: input, shape index: {}]
  %s4 = inlined_call_operand.vmem [shape: f32[1,128], index: 4, kind: input, shape index: {}]
  %s5 = inlined_call_operand.hbm [shape: f32[16,128], index: 5, kind: output, shape index: {}]
  %s6 = sld [smem:[#allocation0]]
  $region50: #{tpu_custom_call.1} parent=0
    _
  %s8 = ssub.s32 1, %s6
  %s9 = scalar_select 0, %s8, %s6
  $region1: #{tpu_custom_call.1} parent=0
    #allocation3 [shape = 'u8[8192]{0}', space=vmem, size = 0x2000, scoped, tag = 'input window, operand 0, single buffered']
    #allocation4 [shape = 's32[1]{0}', space=sflag, size = 0x4, scoped, tag = 'scoped memory for tpu_custom_call.1']
    #allocation5 [shape = 's32[1]{0}', space=sflag, size = 0x4, scoped, tag = 'scoped memory for tpu_custom_call.1']
    #allocation6 [shape = 'u8[32768]{0}', space=vmem, size = 0x8000, scoped, tag = 'input window, operand 1, single buffered']
    #allocation7 [shape = 's32[1]{0}', space=sflag, size = 0x4, scoped, tag = 'scoped memory for tpu_custom_call.1']
    #allocation8 [shape = 'u8[32768]{0}', space=vmem, size = 0x8000, scoped, tag = 'input window, operand 3, single buffered']
    #allocation9 [shape = 'u8[8192]{0}', space=vmem, size = 0x2000, scoped, tag = 'output window, operand 0, single buffered']
    %10 = vsyncpa [#allocation4], 0
    %11 = vsyncpa [#allocation7], 0
    %12 = vsyncpa [#allocation5], 0
    // Predicated region
    $region2: #{tpu_custom_call.1} parent=1 // pred_check
      _
    $region3: #{tpu_custom_call.1} parent=1 // pred_check_branch
      %14 = sbr.rel (0) target = $region5
    $region4: #{tpu_custom_call.1} parent=1 // pred_region
      %s16 = ssub.s32 256, 256
      %17 = vsyncadd [#allocation4], %s16
      %s18 = sshll.u32 [#allocation3], 4
      %s19 = int_to_ptr.vmem [resolvable:$true] %s18
      %24 = dma.hbm_to_vmem [thread:$0]  %s0, 256, %s19, [#allocation4], 128, 128, 8
    $region5: #{tpu_custom_call.1} parent=1 // pred_fallthru
      _
    // Predicated region
    $region6: #{tpu_custom_call.1} parent=1 // pred_check
      _
    $region7: #{tpu_custom_call.1} parent=1 // pred_check_branch
      %26 = sbr.rel (0) target = $region9
    $region8: #{tpu_custom_call.1} parent=1 // pred_region
      %s28 = ssub.s32 1024, 1024
      %29 = vsyncadd [#allocation7], %s28
      %s30 = sshll.u32 [#allocation6], 4
      %s31 = int_to_ptr.vmem [resolvable:$true] %s30
      %36 = dma.hbm_to_vmem [thread:$0]  %s1, 1024, %s31, [#allocation7], 64, 64, 4
    $region9: #{tpu_custom_call.1} parent=1 // pred_fallthru
      _
    // Predicated region
    $region10: #{tpu_custom_call.1} parent=1 // pred_check
      _
    $region11: #{tpu_custom_call.1} parent=1 // pred_check_branch
      %38 = sbr.rel (0) target = $region13
    $region12: #{tpu_custom_call.1} parent=1 // pred_region
      _
    $region13: #{tpu_custom_call.1} parent=1 // pred_fallthru
      _
    // Predicated region
    $region14: #{tpu_custom_call.1} parent=1 // pred_check
      _
    $region15: #{tpu_custom_call.1} parent=1 // pred_check_branch
      %40 = sbr.rel (0) target = $region17
    $region16: #{tpu_custom_call.1} parent=1 // pred_region
      %s42 = ssub.s32 1024, 1024
      %43 = vsyncadd [#allocation7], %s42
      %s44 = sshll.u32 [#allocation8], 4
      %s45 = int_to_ptr.vmem [resolvable:$true] %s44
      %50 = dma.hbm_to_vmem [thread:$0]  %s3, 1024, %s45, [#allocation7], 64, 64, 4
    $region17: #{tpu_custom_call.1} parent=1 // pred_fallthru
      _
    // Predicated region
    $region18: #{tpu_custom_call.1} parent=1 // pred_check
      _
    $region19: #{tpu_custom_call.1} parent=1 // pred_check_branch
      %52 = sbr.rel (0) target = $region21
    $region20: #{tpu_custom_call.1} parent=1 // pred_region
      _
    $region21: #{tpu_custom_call.1} parent=1 // pred_fallthru
      _
    // Predicated region
    $region22: #{tpu_custom_call.1} parent=1 // pred_check
      _
    $region23: #{tpu_custom_call.1} parent=1 // pred_check_branch
      %54 = sbr.rel (0) target = $region25
    $region24: #{tpu_custom_call.1} parent=1 // pred_region
      %55 = dma.done [#allocation4], 256
    $region25: #{tpu_custom_call.1} parent=1 // pred_fallthru
      _
    // Predicated region
    $region26: #{tpu_custom_call.1} parent=1 // pred_check
      _
    $region27: #{tpu_custom_call.1} parent=1 // pred_check_branch
      %57 = sbr.rel (0) target = $region29
    $region28: #{tpu_custom_call.1} parent=1 // pred_region
      %58 = dma.done [#allocation7], 1024
    $region29: #{tpu_custom_call.1} parent=1 // pred_fallthru
      _
    // Predicated region
    $region30: #{tpu_custom_call.1} parent=1 // pred_check
      _
    $region31: #{tpu_custom_call.1} parent=1 // pred_check_branch
      %60 = sbr.rel (0) target = $region33
    $region32: #{tpu_custom_call.1} parent=1 // pred_region
      %61 = dma.done [#allocation7], 1024
    $region33: #{tpu_custom_call.1} parent=1 // pred_fallthru
      _
    %p63 = scmp.eq.s32.totalorder 0, 0
    // Predicated region
    $region34: #{tpu_custom_call.1} parent=1 // pred_check
      %p64 = pneg %p63
    $region35: #{tpu_custom_call.1} parent=1 // pred_check_branch
      %66 = sbr.rel (%p64) target = $region37
    $region36: #{tpu_custom_call.1} parent=1 // pred_region
      %67 = vst [vmem:[#allocation2] sm:$0xff] 0.0
      %68 = vst [vmem:[#allocation2 + $0x8] sm:$0xff] 0.0
    $region37: #{tpu_custom_call.1} parent=1 // pred_fallthru
      _
    %v69 = vld [vmem:[#allocation3] sm:$0xff]
    %v70 = vld [vmem:[#allocation3 + $0x8] sm:$0xff]
    %v71 = vpack.c.bf16 %v70, %v69
    %v72 = vld [vmem:[#allocation6] sm:$0xf]
    %v73 = vld [vmem:[#allocation6 + $0x4] sm:$0xf]
    %v74 = vld [vmem:[#allocation6 + $0x8] sm:$0xf]
    %v75 = vld [vmem:[#allocation6 + $0xc] sm:$0xf]
    %v76 = vld [vmem:[#allocation6 + $0x10] sm:$0xf]
    %v77 = vld [vmem:[#allocation6 + $0x14] sm:$0xf]
    %v78 = vld [vmem:[#allocation6 + $0x18] sm:$0xf]
    %v79 = vld [vmem:[#allocation6 + $0x1c] sm:$0xf]
    %v80 = vld [vmem:[#allocation6 + $0x20] sm:$0xf]
    %v81 = vld [vmem:[#allocation6 + $0x24] sm:$0xf]
    %v82 = vld [vmem:[#allocation6 + $0x28] sm:$0xf]
    %v83 = vld [vmem:[#allocation6 + $0x2c] sm:$0xf]
    %v84 = vld [vmem:[#allocation6 + $0x30] sm:$0xf]
    %v85 = vld [vmem:[#allocation6 + $0x34] sm:$0xf]
    %v86 = vld [vmem:[#allocation6 + $0x38] sm:$0xf]
    %v87 = vld [vmem:[#allocation6 + $0x3c] sm:$0xf]
    %v88 = vld [vmem:[%s2] sm:$0x1]
    %v90 = vlaneseq
    %v91 = vshrl.u32 %v90, 7
    %v92 = vsub.s32 0, %v91
    %v93 = vrot.slane %v88, %v92
    %v111 = vunpack.c.l.b16 %v72
    %v112 = vunpack.c.l.b16 %v73
    %v113 = vunpack.c.l.b16 %v74
    %v114 = vunpack.c.l.b16 %v75
    %v115 = vunpack.c.l.b16 %v76
    %v116 = vunpack.c.l.b16 %v77
    %v117 = vunpack.c.l.b16 %v78
    %v118 = vunpack.c.l.b16 %v79
    %v119 = vunpack.c.l.b16 %v80
    %v120 = vunpack.c.l.b16 %v81
    %v121 = vunpack.c.l.b16 %v82
    %v122 = vunpack.c.l.b16 %v83
    %v123 = vunpack.c.l.b16 %v84
    %v124 = vunpack.c.l.b16 %v85
    %v125 = vunpack.c.l.b16 %v86
    %v126 = vunpack.c.l.b16 %v87
    %v127 = vpack.c.b16 %v112, %v111
    %v128 = vpack.c.b16 %v114, %v113
    %v129 = vpack.c.b16 %v116, %v115
    %v130 = vpack.c.b16 %v118, %v117
    %v131 = vpack.c.b16 %v120, %v119
    %v132 = vpack.c.b16 %v122, %v121
    %v133 = vpack.c.b16 %v124, %v123
    %v134 = vpack.c.b16 %v126, %v125
    %143 = vmatprep.subr.bf16.mxu0 0
    %144 = vmatpush1.bf16.msra.mxu0 %v127
    %145 = vmatprep.subr.bf16.mxu0 0
    %146 = vmatpush1.bf16.msra.mxu0 %v128
    %147 = vmatprep.subr.bf16.mxu0 0
    %148 = vmatpush1.bf16.msra.mxu0 %v129
    %149 = vmatprep.subr.bf16.mxu0 0
    %150 = vmatpush1.bf16.msra.mxu0 %v130
    %151 = vmatprep.subr.bf16.mxu0 0
    %152 = vmatpush1.bf16.msra.mxu0 %v131
    %153 = vmatprep.subr.bf16.mxu0 0
    %154 = vmatpush1.bf16.msra.mxu0 %v132
    %155 = vmatprep.subr.bf16.mxu0 0
    %156 = vmatpush1.bf16.msra.mxu0 %v133
    %157 = vmatprep.subr.bf16.mxu0 0
    %158 = vmatpush1.bf16.msra.mxu0 %v134
    %159 = vmatprep.subr.bf16.mxu0 0
    %160 = vmatpush1.bf16.msra.mxu0 0
    %161 = vmatprep.subr.bf16.mxu0 0
    %162 = vmatpush1.bf16.msra.mxu0 0
    %163 = vmatprep.subr.bf16.mxu0 0
    %164 = vmatpush1.bf16.msra.mxu0 0
    %165 = vmatprep.subr.bf16.mxu0 0
    %166 = vmatpush1.bf16.msra.mxu0 0
    %167 = vmatprep.subr.bf16.mxu0 0
    %168 = vmatpush1.bf16.msra.mxu0 0
    %169 = vmatprep.subr.bf16.mxu0 0
    %170 = vmatpush1.bf16.msra.mxu0 0
    %171 = vmatprep.subr.bf16.mxu0 0
    %172 = vmatpush1.bf16.msra.mxu0 0
    %173 = vmatprep.subr.bf16.mxu0 0
    %174 = vmatpush1.bf16.msra.mxu0 0
    %175 = vmatprep.mubr.bf16.mxu0 0
    %176 = vmatmul.mubr.bf16.gmra.mrb[0].mxu0 %v71
    %v177 = vpop.f32.mrb[0].mxu0
    %v178 = vadd.f32 %v93, %v177
    %v179 = vpop.f32.mrb[0].mxu0
    %v180 = vpop.f32.mrb[0].mxu0
    %v181 = vadd.f32 %v93, %v180
    %v182 = vpop.f32.mrb[0].mxu0
    %183 = vdwg.mxu0
    %v184 = vmul.f32 %v178, %v178
    %v185 = vmul.f32 %v181, %v181
    %v186 = vmul.f32 %v178, %v184
    %v187 = vmul.f32 %v181, %v185
    %v188 = vmul.f32 %v186, 0.044715
    %v189 = vmul.f32 %v187, 0.044715
    %v190 = vadd.f32 %v178, %v188
    %v191 = vadd.f32 %v181, %v189
    %v192 = vmul.f32 %v190, 0.7978846
    %v193 = vmul.f32 %v191, 0.7978846
    %v194 = vtanh.pop %v192
    %v195 = vtanh.pop %v193
    %v196 = vadd.f32 %v194, 1.0
    %v197 = vadd.f32 %v195, 1.0
    %v198 = vmul.f32 %v196, 0.5
    %v199 = vmul.f32 %v197, 0.5
    %v200 = vmul.f32 %v178, %v198
    %v201 = vmul.f32 %v181, %v199
    %v202 = vld [vmem:[#allocation2] sm:$0xff]
    %v203 = vld [vmem:[#allocation2 + $0x8] sm:$0xff]
    %v204 = vpack.c.bf16 %v201, %v200
    %v205 = vld [vmem:[#allocation8] sm:$0xf]
    %v206 = vld [vmem:[#allocation8 + $0x4] sm:$0xf]
    %v207 = vld [vmem:[#allocation8 + $0x8] sm:$0xf]
    %v208 = vld [vmem:[#allocation8 + $0xc] sm:$0xf]
    %v209 = vld [vmem:[#allocation8 + $0x10] sm:$0xf]
    %v210 = vld [vmem:[#allocation8 + $0x14] sm:$0xf]
    %v211 = vld [vmem:[#allocation8 + $0x18] sm:$0xf]
    %v212 = vld [vmem:[#allocation8 + $0x1c] sm:$0xf]
    %v213 = vld [vmem:[#allocation8 + $0x20] sm:$0xf]
    %v214 = vld [vmem:[#allocation8 + $0x24] sm:$0xf]
    %v215 = vld [vmem:[#allocation8 + $0x28] sm:$0xf]
    %v216 = vld [vmem:[#allocation8 + $0x2c] sm:$0xf]
    %v217 = vld [vmem:[#allocation8 + $0x30] sm:$0xf]
    %v218 = vld [vmem:[#allocation8 + $0x34] sm:$0xf]
    %v219 = vld [vmem:[#allocation8 + $0x38] sm:$0xf]
    %v220 = vld [vmem:[#allocation8 + $0x3c] sm:$0xf]
    %v237 = vunpack.c.l.b16 %v205
    %v238 = vunpack.c.l.b16 %v206
    %v239 = vunpack.c.l.b16 %v207
    %v240 = vunpack.c.l.b16 %v208
    %v241 = vunpack.c.l.b16 %v209
    %v242 = vunpack.c.l.b16 %v210
    %v243 = vunpack.c.l.b16 %v211
    %v244 = vunpack.c.l.b16 %v212
    %v245 = vunpack.c.l.b16 %v213
    %v246 = vunpack.c.l.b16 %v214
    %v247 = vunpack.c.l.b16 %v215
    %v248 = vunpack.c.l.b16 %v216
    %v249 = vunpack.c.l.b16 %v217
    %v250 = vunpack.c.l.b16 %v218
    %v251 = vunpack.c.l.b16 %v219
    %v252 = vunpack.c.l.b16 %v220
    %v253 = vpack.c.b16 %v238, %v237
    %v254 = vpack.c.b16 %v240, %v239
    %v255 = vpack.c.b16 %v242, %v241
    %v256 = vpack.c.b16 %v244, %v243
    %v257 = vpack.c.b16 %v246, %v245
    %v258 = vpack.c.b16 %v248, %v247
    %v259 = vpack.c.b16 %v250, %v249
    %v260 = vpack.c.b16 %v252, %v251
    %269 = vmatprep.subr.bf16.mxu0 0
    %270 = vmatpush1.bf16.msra.mxu0 %v253
    %271 = vmatprep.subr.bf16.mxu0 0
    %272 = vmatpush1.bf16.msra.mxu0 %v254
    %273 = vmatprep.subr.bf16.mxu0 0
    %274 = vmatpush1.bf16.msra.mxu0 %v255
    %275 = vmatprep.subr.bf16.mxu0 0
    %276 = vmatpush1.bf16.msra.mxu0 %v256
    %277 = vmatprep.subr.bf16.mxu0 0
    %278 = vmatpush1.bf16.msra.mxu0 %v257
    %279 = vmatprep.subr.bf16.mxu0 0
    %280 = vmatpush1.bf16.msra.mxu0 %v258
    %281 = vmatprep.subr.bf16.mxu0 0
    %282 = vmatpush1.bf16.msra.mxu0 %v259
    %283 = vmatprep.subr.bf16.mxu0 0
    %284 = vmatpush1.bf16.msra.mxu0 %v260
    %285 = vmatprep.subr.bf16.mxu0 0
    %286 = vmatpush1.bf16.msra.mxu0 0
    %287 = vmatprep.subr.bf16.mxu0 0
    %288 = vmatpush1.bf16.msra.mxu0 0
    %289 = vmatprep.subr.bf16.mxu0 0
    %290 = vmatpush1.bf16.msra.mxu0 0
    %291 = vmatprep.subr.bf16.mxu0 0
    %292 = vmatpush1.bf16.msra.mxu0 0
    %293 = vmatprep.subr.bf16.mxu0 0
    %294 = vmatpush1.bf16.msra.mxu0 0
    %295 = vmatprep.subr.bf16.mxu0 0
    %296 = vmatpush1.bf16.msra.mxu0 0
    %297 = vmatprep.subr.bf16.mxu0 0
    %298 = vmatpush1.bf16.msra.mxu0 0
    %299 = vmatprep.subr.bf16.mxu0 0
    %300 = vmatpush1.bf16.msra.mxu0 0
    %301 = vmatprep.mubr.bf16.mxu0 0
    %302 = vmatmul.mubr.bf16.gmra.mrb[0].mxu0 %v204
    %v303 = vpop.f32.mrb[0].mxu0
    %v304 = vadd.f32 0.0, %v303
    %v305 = vpop.f32.mrb[0].mxu0
    %v306 = vpop.f32.mrb[0].mxu0
    %v307 = vadd.f32 0.0, %v306
    %v308 = vpop.f32.mrb[0].mxu0
    %309 = vdwg.mxu0
    %v310 = vadd.f32 %v202, %v304
    %v311 = vadd.f32 %v203, %v307
    %312 = vst [vmem:[#allocation2] sm:$0xff] %v310
    %313 = vst [vmem:[#allocation2 + $0x8] sm:$0xff] %v311
    // Predicated region
    $region38: #{tpu_custom_call.1} parent=1 // pred_check
      %p314 = pneg %p63
    $region39: #{tpu_custom_call.1} parent=1 // pred_check_branch
      %316 = sbr.rel (%p314) target = $region41
    $region40: #{tpu_custom_call.1} parent=1 // pred_region
      %v317 = vld [vmem:[#allocation2] sm:$0xff]
      %v318 = vld [vmem:[#allocation2 + $0x8] sm:$0xff]
      %v319 = vld [vmem:[%s4] sm:$0x1]
      %v321 = vlaneseq
      %v322 = vshrl.u32 %v321, 7
      %v323 = vsub.s32 0, %v322
      %v324 = vrot.slane %v319, %v323
      %v326 = vadd.f32 %v317, %v324
      %v327 = vadd.f32 %v318, %v324
      %v328 = vadd.f32 %v326, %v69
      %v329 = vadd.f32 %v327, %v70
      %330 = vst [vmem:[#allocation9] sm:$0xff] %v328
      %331 = vst [vmem:[#allocation9 + $0x8] sm:$0xff] %v329
    $region41: #{tpu_custom_call.1} parent=1 // pred_fallthru
      _
    // Predicated region
    $region42: #{tpu_custom_call.1} parent=1 // pred_check
      _
    $region43: #{tpu_custom_call.1} parent=1 // pred_check_branch
      %333 = sbr.rel (0) target = $region45
    $region44: #{tpu_custom_call.1} parent=1 // pred_region
      %s335 = ssub.s32 256, 256
      %336 = vsyncadd [#allocation5], %s335
      %s337 = sshll.u32 [#allocation9], 4
      %s338 = int_to_ptr.vmem [resolvable:$true] %s337
      %343 = dma.vmem_to_hbm [thread:$0]  %s338, 256, %s5, [#allocation5], 128, 128, 8
    $region45: #{tpu_custom_call.1} parent=1 // pred_fallthru
      _
    // Predicated region
    $region46: #{tpu_custom_call.1} parent=1 // pred_check
      _
    $region47: #{tpu_custom_call.1} parent=1 // pred_check_branch
      %345 = sbr.rel (0) target = $region49
    $region48: #{tpu_custom_call.1} parent=1 // pred_region
      %346 = dma.done [#allocation5], 256
    $region49: #{tpu_custom_call.1} parent=1 // pred_fallthru
      _
    %347 = vsyncpa [#allocation4], 1
    %348 = vsyncpa [#allocation7], 1
    %349 = vsyncpa [#allocation5], 1

</llo_original>
